<compile_context>
chip_gen: v7x
topology: tpu7x:2x2x1
jax: 0.10.0
libtpu: 0.0.40
codegen_flags: <defaults>
</compile_context>

<pallas_src>
import math

import jax
import jax.numpy as jnp
from jax.experimental import pallas as pl
from jax.experimental.pallas import tpu as pltpu

DROP_P = 0.2
INV_KEEP = 1.0 / (1.0 - DROP_P)   # reference rescale 1/(1-p)
SCALE = 1.0 / 0.1                 # qk.div(0.1)
# drop an element iff its uint8 draw < 51  (P(drop) = 51/256 ~= 0.1992)
DROP_THRESHOLD = 51               # plain Python int -> inlined literal, not a captured array


def _attn_dropout_kernel(q_ref, k_ref, v_ref, bits_ref, o_ref, m_sc, l_sc, acc_sc):
    kv = pl.program_id(1)

    @pl.when(kv == 0)
    def _init():
        m_sc[...] = jnp.full(m_sc.shape, -jnp.inf, dtype=m_sc.dtype)
        l_sc[...] = jnp.zeros(l_sc.shape, dtype=l_sc.dtype)
        acc_sc[...] = jnp.zeros(acc_sc.shape, dtype=acc_sc.dtype)

    # Fold the 1/0.1 scale into q (Sk/D x fewer VPU muls than scaling the scores) and
    # feed the MXU bf16 operands with f32 accumulation.
    q = (q_ref[...] * SCALE).astype(jnp.bfloat16)      # (Bblk, Sq, D)
    k = k_ref[...].astype(jnp.bfloat16)                # (Bblk, Skt, D)

    # s = (q/0.1) @ k^T, contracting the feature axis directly (no explicit transpose).
    s = jax.lax.dot_general(q, k, (((2,), (2,)), ((0,), (0,))),
                            preferred_element_type=jnp.float32)    # (Bblk, Sq, Skt)

    # Online softmax update.
    m_prev = m_sc[...]
    m_new = jnp.maximum(m_prev, jnp.max(s, axis=-1, keepdims=True))
    alpha = jnp.exp(m_prev - m_new)
    p = jnp.exp(s - m_new)                                          # unnormalized probs
    l_sc[...] = alpha * l_sc[...] + jnp.sum(p, axis=-1, keepdims=True)

    # dropout(p=0.2): keep-mask with the 1/(1-p) rescale folded into one select.
    # The final division by l (pre-dropout row sum) commutes with the per-element mask,
    # so this equals softmax -> dropout -> matmul of the reference module.
    keep_scale = jnp.where(bits_ref[...].astype(jnp.int32) >= DROP_THRESHOLD,
                           INV_KEEP, 0.0)
    p_drop = (p * keep_scale).astype(jnp.bfloat16)
    v = v_ref[...].astype(jnp.bfloat16)

    acc_sc[...] = alpha * acc_sc[...] + jax.lax.dot_general(
        p_drop, v, (((2,), (1,)), ((0,), (0,))),
        preferred_element_type=jnp.float32)
    m_sc[...] = m_new

    @pl.when(kv == pl.num_programs(1) - 1)
    def _finalize():
        o_ref[...] = (acc_sc[...] / l_sc[...]).astype(o_ref.dtype)


def _pick_kv_tile(n, max_tile=512, multiple=128):
    """Largest divisor of n that is <= max_tile and a multiple of `multiple`;
    falls back to the full extent (always a legal block)."""
    if n <= max_tile:
        return n
    for t in range(max_tile, 0, -1):
        if n % t == 0 and t % multiple == 0:
            return t
    return n


def attention_dropout(q, k, v, dropout_key):
    B, Sq, D = q.shape
    Bk, Sk, Dk = k.shape
    Bv, Skv, Dv = v.shape
    assert (B, D) == (Bk, Dk) and (B, Sk) == (Bv, Skv)

    q = q.astype(jnp.float32)
    k = k.astype(jnp.float32)
    v = v.astype(jnp.float32)

    # TODO(synk): torch's dropout RNG stream is not reproduced; the mask comes from uint8
    # jax.random draws (keep prob 205/256 ~= 0.8008, rescale 1.25), so outputs match the
    # reference only in expectation, not elementwise.
    bits = jax.random.bits(dropout_key, (B, Sq, Sk), dtype=jnp.uint8)

    # Batch block: keep the "parallel" axis at >= 2 grid steps when possible (v7x: 2 TCs).
    Bblk = math.gcd(B, 8)
    while Bblk > 1 and (B // Bblk) < 2:
        Bblk //= 2                      # gcd(B, 8) is a power of two dividing B
    # KV tile for the online softmax (bounds VMEM to O(Sq * (Sk_tile + Dv))).
    Sk_t = _pick_kv_tile(Sk)
    grid = (B // Bblk, Sk // Sk_t)

    f32 = 4
    block_bytes = ((Bblk * Sq * D + Bblk * Sk_t * (D + Dv) + Bblk * Sq * Dv) * f32
                   + Bblk * Sq * Sk_t)                     # bits are uint8
    scratch_bytes = Bblk * Sq * (Dv + 2) * f32
    vmem_limit = int(min(48 << 20, max(16 << 20, 3 * block_bytes + scratch_bytes)))

    cost = pl.CostEstimate(
        flops=2 * B * Sq * Sk * (D + Dv),
        transcendentals=B * Sq * Sk,
        bytes_accessed=(B * Sq * D + B * Sk * (D + Dv) + B * Sq * Dv) * f32 + B * Sq * Sk,
    )

    out = pl.pallas_call(
        _attn_dropout_kernel,
        out_shape=jax.ShapeDtypeStruct((B, Sq, Dv), jnp.float32),
        grid=grid,
        in_specs=[
            pl.BlockSpec((Bblk, Sq, D), lambda b, kv: (b, 0, 0)),
            pl.BlockSpec((Bblk, Sk_t, D), lambda b, kv: (b, kv, 0)),
            pl.BlockSpec((Bblk, Sk_t, Dv), lambda b, kv: (b, kv, 0)),
            pl.BlockSpec((Bblk, Sq, Sk_t), lambda b, kv: (b, 0, kv)),
        ],
        out_specs=pl.BlockSpec((Bblk, Sq, Dv), lambda b, kv: (b, 0, 0)),
        scratch_shapes=[
            pltpu.VMEM((Bblk, Sq, 1), jnp.float32),    # running max  m
            pltpu.VMEM((Bblk, Sq, 1), jnp.float32),    # running sum  l
            pltpu.VMEM((Bblk, Sq, Dv), jnp.float32),   # output accumulator
        ],
        compiler_params=pltpu.CompilerParams(
            dimension_semantics=("parallel", "arbitrary"),
            vmem_limit_bytes=vmem_limit,
        ),
        cost_estimate=cost,
    )(q, k, v, bits)
    return out


if __name__ == "__main__":
    key = jax.random.PRNGKey(0)
    kq, kk, kv_key, kdrop = jax.random.split(key, 4)

    # Small shapes consistent with the module's forward:
    # q (B, Sq, D), k (B, Sk, D), v (B, Sk, Dv) -> out (B, Sq, Dv)
    B, Sq, Sk, D, Dv = 2, 8, 16, 32, 32
    q = jax.random.normal(kq, (B, Sq, D), dtype=jnp.float32)
    k = jax.random.normal(kk, (B, Sk, D), dtype=jnp.float32)
    v = jax.random.normal(kv_key, (B, Sk, Dv), dtype=jnp.float32)

    out = attention_dropout(q, k, v, dropout_key=kdrop)
    out = jax.block_until_ready(out)

    assert out.shape == (B, Sq, Dv)
    assert bool(jnp.all(jnp.isfinite(out)))
    print("KERNEL_OK")
</pallas_src>

<mosaic_0001>
module attributes {stable_mosaic.version = 11 : i64} {
  func.func @_attn_dropout_kernel(%arg0: i32, %arg1: i32, %arg2: memref<1x8x32xf32, #tpu.memory_space<vmem>>, %arg3: memref<1x16x32xf32, #tpu.memory_space<vmem>>, %arg4: memref<1x16x32xf32, #tpu.memory_space<vmem>>, %arg5: memref<1x8x16xi8, #tpu.memory_space<vmem>>, %arg6: memref<1x8x32xf32, #tpu.memory_space<vmem>>, %arg7: memref<1x8x1xf32, #tpu.memory_space<vmem>>, %arg8: memref<1x8x1xf32, #tpu.memory_space<vmem>>, %arg9: memref<1x8x32xf32, #tpu.memory_space<vmem>>) attributes {dimension_semantics = [#tpu.dimension_semantics<parallel>, #tpu.dimension_semantics<arbitrary>], iteration_bounds = array<i64: 2, 1>, scalar_prefetch = 0 : i64, scratch_operands = 3 : i64, tpu.core_type = #tpu.core_type<tc>, window_params = [{transform_indices = @transform_0, window_bounds = array<i64: 1, 8, 32>}, {transform_indices = @transform_1, window_bounds = array<i64: 1, 16, 32>}, {transform_indices = @transform_2, window_bounds = array<i64: 1, 16, 32>}, {transform_indices = @transform_3, window_bounds = array<i64: 1, 8, 16>}, {transform_indices = @transform_4, window_bounds = array<i64: 1, 8, 32>}]} {
    %c0_i32 = arith.constant 0 : i32
    %0 = arith.cmpi eq, %arg1, %c0_i32 : i32
    %1 = arith.extui %0 : i1 to i32
    %c0_i32_0 = arith.constant 0 : i32
    %2 = arith.cmpi ne, %1, %c0_i32_0 : i32
    scf.if %2 {
      %cst_38 = arith.constant 0xFF800000 : f32
      %46 = vector.broadcast %cst_38 : f32 to vector<1x8x1xf32>
      %c0_39 = arith.constant 0 : index
      %c0_40 = arith.constant 0 : index
      %c0_41 = arith.constant 0 : index
      %47 = vector.load %arg7[%c0_39, %c0_40, %c0_41] : memref<1x8x1xf32, #tpu.memory_space<vmem>>, vector<1x8x1xf32>
      tpu.vector_store %arg7[%c0_39, %c0_40, %c0_41], %46 {strides = array<i32>} : memref<1x8x1xf32, #tpu.memory_space<vmem>>, vector<1x8x1xf32>,
      %cst_42 = arith.constant 0.000000e+00 : f32
      %48 = vector.broadcast %cst_42 : f32 to vector<1x8x1xf32>
      %c0_43 = arith.constant 0 : index
      %c0_44 = arith.constant 0 : index
      %c0_45 = arith.constant 0 : index
      %49 = vector.load %arg8[%c0_43, %c0_44, %c0_45] : memref<1x8x1xf32, #tpu.memory_space<vmem>>, vector<1x8x1xf32>
      tpu.vector_store %arg8[%c0_43, %c0_44, %c0_45], %48 {strides = array<i32>} : memref<1x8x1xf32, #tpu.memory_space<vmem>>, vector<1x8x1xf32>,
      %cst_46 = arith.constant 0.000000e+00 : f32
      %50 = vector.broadcast %cst_46 : f32 to vector<1x8x32xf32>
      %c0_47 = arith.constant 0 : index
      %c0_48 = arith.constant 0 : index
      %c0_49 = arith.constant 0 : index
      %51 = vector.load %arg9[%c0_47, %c0_48, %c0_49] : memref<1x8x32xf32, #tpu.memory_space<vmem>>, vector<1x8x32xf32>
      tpu.vector_store %arg9[%c0_47, %c0_48, %c0_49], %50 {strides = array<i32>} : memref<1x8x32xf32, #tpu.memory_space<vmem>>, vector<1x8x32xf32>,
    } else {
    }
    %c0 = arith.constant 0 : index
    %c0_1 = arith.constant 0 : index
    %c0_2 = arith.constant 0 : index
    %3 = vector.load %arg2[%c0, %c0_1, %c0_2] : memref<1x8x32xf32, #tpu.memory_space<vmem>>, vector<1x8x32xf32>
    %cst = arith.constant 1.000000e+01 : f32
    %4 = vector.broadcast %cst : f32 to vector<1x8x32xf32>
    %5 = arith.mulf %3, %4 : vector<1x8x32xf32>
    %6 = arith.truncf %5 : vector<1x8x32xf32> to vector<1x8x32xbf16>
    %c0_3 = arith.constant 0 : index
    %c0_4 = arith.constant 0 : index
    %c0_5 = arith.constant 0 : index
    %7 = vector.load %arg3[%c0_3, %c0_4, %c0_5] : memref<1x16x32xf32, #tpu.memory_space<vmem>>, vector<1x16x32xf32>
    %8 = arith.truncf %7 : vector<1x16x32xf32> to vector<1x16x32xbf16>
    %cst_6 = arith.constant dense<0.000000e+00> : vector<1x8x16xf32>
    %9 = tpu.matmul %6, %8, %cst_6 {dimension_numbers = #tpu.dot_dimension_numbers<[2], [2], [1], [1], [0, 0, 0, 1, 1, 1], [0], [0]>} : vector<1x8x32xbf16>, vector<1x16x32xbf16>, vector<1x8x16xf32> -> vector<1x8x16xf32>
    %c0_7 = arith.constant 0 : index
    %c0_8 = arith.constant 0 : index
    %c0_9 = arith.constant 0 : index
    %10 = vector.load %arg7[%c0_7, %c0_8, %c0_9] : memref<1x8x1xf32, #tpu.memory_space<vmem>>, vector<1x8x1xf32>
    %cst_10 = arith.constant dense<0xFF800000> : vector<1x8xf32>
    %11 = vector.multi_reduction <maximumf>, %9, %cst_10 [2] : vector<1x8x16xf32> to vector<1x8xf32>
    %12 = vector.shape_cast %11 : vector<1x8xf32> to vector<1x8x1xf32>
    %13 = arith.maximumf %10, %12 : vector<1x8x1xf32>
    %14 = arith.subf %10, %13 : vector<1x8x1xf32>
    %15 = math.exp %14 : vector<1x8x1xf32>
    %16 = vector.broadcast %13 : vector<1x8x1xf32> to vector<1x8x16xf32>
    %17 = arith.subf %9, %16 : vector<1x8x16xf32>
    %18 = math.exp %17 : vector<1x8x16xf32>
    %c0_11 = arith.constant 0 : index
    %c0_12 = arith.constant 0 : index
    %c0_13 = arith.constant 0 : index
    %19 = vector.load %arg8[%c0_11, %c0_12, %c0_13] : memref<1x8x1xf32, #tpu.memory_space<vmem>>, vector<1x8x1xf32>
    %20 = arith.mulf %15, %19 : vector<1x8x1xf32>
    %cst_14 = arith.constant dense<0.000000e+00> : vector<1x8xf32>
    %21 = vector.multi_reduction <add>, %18, %cst_14 [2] : vector<1x8x16xf32> to vector<1x8xf32>
    %22 = vector.shape_cast %21 : vector<1x8xf32> to vector<1x8x1xf32>
    %23 = arith.addf %20, %22 : vector<1x8x1xf32>
    %c0_15 = arith.constant 0 : index
    %c0_16 = arith.constant 0 : index
    %c0_17 = arith.constant 0 : index
    %24 = vector.load %arg8[%c0_15, %c0_16, %c0_17] : memref<1x8x1xf32, #tpu.memory_space<vmem>>, vector<1x8x1xf32>
    tpu.vector_store %arg8[%c0_15, %c0_16, %c0_17], %23 {strides = array<i32>} : memref<1x8x1xf32, #tpu.memory_space<vmem>>, vector<1x8x1xf32>,
    %c0_18 = arith.constant 0 : index
    %c0_19 = arith.constant 0 : index
    %c0_20 = arith.constant 0 : index
    %25 = vector.load %arg5[%c0_18, %c0_19, %c0_20] : memref<1x8x16xi8, #tpu.memory_space<vmem>>, vector<1x8x16xi8>
    %26 = arith.extui %25 : vector<1x8x16xi8> to vector<1x8x16xi32>
    %c51_i32 = arith.constant 51 : i32
    %27 = vector.broadcast %c51_i32 : i32 to vector<1x8x16xi32>
    %28 = arith.cmpi sge, %26, %27 : vector<1x8x16xi32>
    %cst_21 = arith.constant 1.250000e+00 : f32
    %cst_22 = arith.constant 0.000000e+00 : f32
    %29 = vector.broadcast %cst_21 : f32 to vector<1x8x16xf32>
    %30 = vector.broadcast %cst_22 : f32 to vector<1x8x16xf32>
    %31 = arith.select %28, %29, %30 : vector<1x8x16xi1>, vector<1x8x16xf32>
    %32 = arith.mulf %18, %31 : vector<1x8x16xf32>
    %33 = arith.truncf %32 : vector<1x8x16xf32> to vector<1x8x16xbf16>
    %c0_23 = arith.constant 0 : index
    %c0_24 = arith.constant 0 : index
    %c0_25 = arith.constant 0 : index
    %34 = vector.load %arg4[%c0_23, %c0_24, %c0_25] : memref<1x16x32xf32, #tpu.memory_space<vmem>>, vector<1x16x32xf32>
    %35 = arith.truncf %34 : vector<1x16x32xf32> to vector<1x16x32xbf16>
    %c0_26 = arith.constant 0 : index
    %c0_27 = arith.constant 0 : index
    %c0_28 = arith.constant 0 : index
    %36 = vector.load %arg9[%c0_26, %c0_27, %c0_28] : memref<1x8x32xf32, #tpu.memory_space<vmem>>, vector<1x8x32xf32>
    %37 = vector.broadcast %15 : vector<1x8x1xf32> to vector<1x8x32xf32>
    %38 = arith.mulf %37, %36 : vector<1x8x32xf32>
    %cst_29 = arith.constant dense<0.000000e+00> : vector<1x8x32xf32>
    %39 = tpu.matmul %33, %35, %cst_29 {dimension_numbers = #tpu.dot_dimension_numbers<[2], [1], [1], [2], [0, 0, 0, 1, 1, 2], [0], [0]>} : vector<1x8x16xbf16>, vector<1x16x32xbf16>, vector<1x8x32xf32> -> vector<1x8x32xf32>
    %40 = arith.addf %38, %39 : vector<1x8x32xf32>
    %c0_30 = arith.constant 0 : index
    %c0_31 = arith.constant 0 : index
    %c0_32 = arith.constant 0 : index
    %41 = vector.load %arg9[%c0_30, %c0_31, %c0_32] : memref<1x8x32xf32, #tpu.memory_space<vmem>>, vector<1x8x32xf32>
    tpu.vector_store %arg9[%c0_30, %c0_31, %c0_32], %40 {strides = array<i32>} : memref<1x8x32xf32, #tpu.memory_space<vmem>>, vector<1x8x32xf32>,
    %c0_33 = arith.constant 0 : index
    %c0_34 = arith.constant 0 : index
    %c0_35 = arith.constant 0 : index
    %42 = vector.load %arg7[%c0_33, %c0_34, %c0_35] : memref<1x8x1xf32, #tpu.memory_space<vmem>>, vector<1x8x1xf32>
    tpu.vector_store %arg7[%c0_33, %c0_34, %c0_35], %13 {strides = array<i32>} : memref<1x8x1xf32, #tpu.memory_space<vmem>>, vector<1x8x1xf32>,
    %c0_i32_36 = arith.constant 0 : i32
    %43 = arith.cmpi eq, %arg1, %c0_i32_36 : i32
    %44 = arith.extui %43 : i1 to i32
    %c0_i32_37 = arith.constant 0 : i32
    %45 = arith.cmpi ne, %44, %c0_i32_37 : i32
    scf.if %45 {
      %c0_38 = arith.constant 0 : index
      %c0_39 = arith.constant 0 : index
      %c0_40 = arith.constant 0 : index
      %46 = vector.load %arg9[%c0_38, %c0_39, %c0_40] : memref<1x8x32xf32, #tpu.memory_space<vmem>>, vector<1x8x32xf32>
      %c0_41 = arith.constant 0 : index
      %c0_42 = arith.constant 0 : index
      %c0_43 = arith.constant 0 : index
      %47 = vector.load %arg8[%c0_41, %c0_42, %c0_43] : memref<1x8x1xf32, #tpu.memory_space<vmem>>, vector<1x8x1xf32>
      %48 = vector.broadcast %47 : vector<1x8x1xf32> to vector<1x8x32xf32>
      %49 = arith.divf %46, %48 : vector<1x8x32xf32>
      %c0_44 = arith.constant 0 : index
      %c0_45 = arith.constant 0 : index
      %c0_46 = arith.constant 0 : index
      %50 = vector.load %arg6[%c0_44, %c0_45, %c0_46] : memref<1x8x32xf32, #tpu.memory_space<vmem>>, vector<1x8x32xf32>
      tpu.vector_store %arg6[%c0_44, %c0_45, %c0_46], %49 {strides = array<i32>} : memref<1x8x32xf32, #tpu.memory_space<vmem>>, vector<1x8x32xf32>,
    } else {
    }
    return
  }
  func.func @transform_0(%arg0: i32, %arg1: i32) -> (i32, i32, i32) {
    %c0_i32 = arith.constant 0 : i32
    %c0_i32_0 = arith.constant 0 : i32
    %c0_i32_1 = arith.constant 0 : i32
    return %arg0, %c0_i32, %c0_i32_0 : i32, i32, i32
  }
  func.func @transform_1(%arg0: i32, %arg1: i32) -> (i32, i32, i32) {
    %c0_i32 = arith.constant 0 : i32
    %c0_i32_0 = arith.constant 0 : i32
    return %arg0, %arg1, %c0_i32 : i32, i32, i32
  }
  func.func @transform_2(%arg0: i32, %arg1: i32) -> (i32, i32, i32) {
    %c0_i32 = arith.constant 0 : i32
    %c0_i32_0 = arith.constant 0 : i32
    return %arg0, %arg1, %c0_i32 : i32, i32, i32
  }
  func.func @transform_3(%arg0: i32, %arg1: i32) -> (i32, i32, i32) {
    %c0_i32 = arith.constant 0 : i32
    %c0_i32_0 = arith.constant 0 : i32
    return %arg0, %c0_i32, %arg1 : i32, i32, i32
  }
  func.func @transform_4(%arg0: i32, %arg1: i32) -> (i32, i32, i32) {
    %c0_i32 = arith.constant 0 : i32
    %c0_i32_0 = arith.constant 0 : i32
    %c0_i32_1 = arith.constant 0 : i32
    return %arg0, %c0_i32, %c0_i32_0 : i32, i32, i32
  }
}

</mosaic_0001>

<llo_original>
// kernel: tpu_custom_call.1
$region0: #{tpu_custom_call.1}
  #allocation0 [shape = 'u32[]', space=smem, size = 0x4, offset = 0x4, fixed_abs, tag = 'smem constant byte address 0x4 - core index']
  #allocation1 [shape = 'u32[144,128]{1,0:T(1,128)}', space=vmem, size = 0x12000, scoped, tag = 'internal scratch']
  #allocation2 [shape = 'f32[1,8,1]{2,1,0:T(8,128)}', space=vmem, size = 0x1000, scoped, tag = 'scratch operand']
  #allocation3 [shape = 'f32[1,8,1]{2,1,0:T(8,128)}', space=vmem, size = 0x1000, scoped, tag = 'scratch operand']
  #allocation4 [shape = 'f32[1,8,32]{2,1,0:T(8,128)}', space=vmem, size = 0x1000, scoped, tag = 'scratch operand']
  %s0 = inlined_call_operand.hbm [shape: f32[2,8,32], index: 0, kind: input, shape index: {}]
  %s1 = inlined_call_operand.hbm [shape: f32[2,16,32], index: 1, kind: input, shape index: {}]
  %s2 = inlined_call_operand.hbm [shape: f32[2,16,32], index: 2, kind: input, shape index: {}]
  %s3 = inlined_call_operand.vmem [shape: u8[2,8,16], index: 3, kind: input, shape index: {}]
  %s4 = inlined_call_operand.hbm [shape: f32[2,8,32], index: 4, kind: output, shape index: {}]
  %s5 = sld [smem:[#allocation0]]
  $region69: #{tpu_custom_call.1} parent=0
    _
  %s7 = ssub.s32 1, %s5
  %s8 = scalar_select 0, %s7, %s5
  $region1: #{tpu_custom_call.1} parent=0
    #allocation5 [shape = 'u8[8192]{0}', space=vmem, size = 0x2000, scoped, tag = 'input window, operand 0']
    #allocation6 [shape = 's32[2]{0}', space=sflag, size = 0x8, scoped, tag = 'scoped memory for tpu_custom_call.1']
    #allocation7 [shape = 's32[2]{0}', space=sflag, size = 0x8, scoped, tag = 'scoped memory for tpu_custom_call.1']
    #allocation8 [shape = 'u8[16384]{0}', space=vmem, size = 0x4000, scoped, tag = 'input window, operand 1']
    #allocation9 [shape = 's32[2]{0}', space=sflag, size = 0x8, scoped, tag = 'scoped memory for tpu_custom_call.1']
    #allocation10 [shape = 'u8[16384]{0}', space=vmem, size = 0x4000, scoped, tag = 'input window, operand 2']
    #allocation11 [shape = 'u8[8192]{0}', space=vmem, size = 0x2000, scoped, tag = 'output window, operand 0']
    %9 = vsyncpa [#allocation6], 0
    %s10 = scalar_lea.sflag [#allocation6], 1
    %11 = vsyncpa %s10, 0
    %12 = vsyncpa [#allocation9], 0
    %s13 = scalar_lea.sflag [#allocation9], 1
    %14 = vsyncpa %s13, 0
    %15 = vsyncpa [#allocation7], 0
    %s16 = scalar_lea.sflag [#allocation7], 1
    %17 = vsyncpa %s16, 0
    loop: start=0, step=1, limit=4
    $region2: #{tpu_custom_call.1} parent=1 // loop_pre_header
      _
    $region3: #{tpu_custom_call.1} parent=1 // loop_header
      %s19 = sphi 0, %s23
      %p20 = scmp.ge.s32.totalorder %s19, 4
      %s26 = sphi 0, %s38
      %s27 = sphi 0, %s34
      %s28 = sphi 0, %s26
      %s29 = sphi 0, %s27
      %s30 = sphi 0, %s28
      %s31 = sphi 0, %s29
      %s41 = sphi 0, %s43
      %s44 = sphi 0, %s41
      %s45 = sphi 0, %s44
      %s61 = sphi 0, %s45
      %s69 = sphi 0, %s71
      %s72 = sphi 0, %s69
      %s73 = sphi 0, %s72
      %s89 = sphi 0, %s73
      %s97 = sphi 0, %s99
      %s100 = sphi 0, %s97
      %s101 = sphi 0, %s100
      %s117 = sphi 0, %s101
      %s125 = sphi 0, %s127
      %s128 = sphi 0, %s125
      %s129 = sphi 0, %s128
      %s145 = sphi 0, %s129
      %s151 = sphi 0, %s153
      %s154 = sphi 0, %s151
      %s155 = sphi 0, %s154
      %s171 = sphi 0, %s155
    $region4: #{tpu_custom_call.1} parent=1 // loop_header_branch
      %22 = sbr.rel (%p20) target = $region8
    $region5: #{tpu_custom_call.1} parent=1 // loop_body
      %s24 = ssub.s32 %s19, 1
      %s25 = ssub.s32 %s19, 2
      %s32 = sadd.s32 1, %s27
      %p33 = scmp.ge.s32.totalorder %s32, 1
      %s34 = scalar_select %p33, 0, %s32
      %s35 = sadd.s32 1, %s26
      %s36 = scalar_select %p33, %s35, %s26
      %p37 = scmp.ge.s32.totalorder %s36, 2
      %s38 = scalar_select %p37, 0, %s36
      %s39 = ssub.s32 %s26, %s38
      %p40 = scmp.eq.s32.totalorder %s39, 0
      %s42 = sadd.s32 %s41, 1
      %s43 = scalar_select %p40, %s41, %s42
      %p46 = pneg %p40
      %p47 = scmp.eq.s32.totalorder %s19, 1
      %p48 = por %p46, %p47
      %p49 = scmp.ne.s32.totalorder %s41, %s44
      %p50 = scmp.eq.s32.totalorder %s19, 0
      %p51 = por %p49, %p50
      %p52 = scmp.ne.s32.totalorder %s41, %s44
      %p53 = scmp.eq.s32.totalorder %s24, 1
      %p54 = por %p52, %p53
      %p55 = scmp.ne.s32.totalorder %s44, %s45
      %p56 = scmp.eq.s32.totalorder %s24, 0
      %p57 = por %p55, %p56
      %p58 = scmp.ne.s32.totalorder %s44, %s45
      %p59 = scmp.eq.s32.totalorder %s25, 1
      %p60 = por %p58, %p59
      %p62 = scmp.ne.s32.totalorder %s45, %s61
      %p63 = scmp.eq.s32.totalorder %s25, 0
      %p64 = por %p62, %p63
      %s65 = ssub.s32 %s26, %s38
      %s66 = ssub.s32 %s27, %s34
      %s67 = sor.u32 %s65, %s66
      %p68 = scmp.eq.s32.totalorder %s67, 0
      %s70 = sadd.s32 %s69, 1
      %s71 = scalar_select %p68, %s69, %s70
      %p74 = pneg %p68
      %p75 = scmp.eq.s32.totalorder %s19, 1
      %p76 = por %p74, %p75
      %p77 = scmp.ne.s32.totalorder %s69, %s72
      %p78 = scmp.eq.s32.totalorder %s19, 0
      %p79 = por %p77, %p78
      %p80 = scmp.ne.s32.totalorder %s69, %s72
      %p81 = scmp.eq.s32.totalorder %s24, 1
      %p82 = por %p80, %p81
      %p83 = scmp.ne.s32.totalorder %s72, %s73
      %p84 = scmp.eq.s32.totalorder %s24, 0
      %p85 = por %p83, %p84
      %p86 = scmp.ne.s32.totalorder %s72, %s73
      %p87 = scmp.eq.s32.totalorder %s25, 1
      %p88 = por %p86, %p87
      %p90 = scmp.ne.s32.totalorder %s73, %s89
      %p91 = scmp.eq.s32.totalorder %s25, 0
      %p92 = por %p90, %p91
      %s93 = ssub.s32 %s26, %s38
      %s94 = ssub.s32 %s27, %s34
      %s95 = sor.u32 %s93, %s94
      %p96 = scmp.eq.s32.totalorder %s95, 0
      %s98 = sadd.s32 %s97, 1
      %s99 = scalar_select %p96, %s97, %s98
      %p102 = pneg %p96
      %p103 = scmp.eq.s32.totalorder %s19, 1
      %p104 = por %p102, %p103
      %p105 = scmp.ne.s32.totalorder %s97, %s100
      %p106 = scmp.eq.s32.totalorder %s19, 0
      %p107 = por %p105, %p106
      %p108 = scmp.ne.s32.totalorder %s97, %s100
      %p109 = scmp.eq.s32.totalorder %s24, 1
      %p110 = por %p108, %p109
      %p111 = scmp.ne.s32.totalorder %s100, %s101
      %p112 = scmp.eq.s32.totalorder %s24, 0
      %p113 = por %p111, %p112
      %p114 = scmp.ne.s32.totalorder %s100, %s101
      %p115 = scmp.eq.s32.totalorder %s25, 1
      %p116 = por %p114, %p115
      %p118 = scmp.ne.s32.totalorder %s101, %s117
      %p119 = scmp.eq.s32.totalorder %s25, 0
      %p120 = por %p118, %p119
      %s121 = ssub.s32 %s26, %s38
      %s122 = ssub.s32 %s27, %s34
      %s123 = sor.u32 %s121, %s122
      %p124 = scmp.eq.s32.totalorder %s123, 0
      %s126 = sadd.s32 %s125, 1
      %s127 = scalar_select %p124, %s125, %s126
      %p130 = pneg %p124
      %p131 = scmp.eq.s32.totalorder %s19, 1
      %p132 = por %p130, %p131
      %p133 = scmp.ne.s32.totalorder %s125, %s128
      %p134 = scmp.eq.s32.totalorder %s19, 0
      %p135 = por %p133, %p134
      %p136 = scmp.ne.s32.totalorder %s125, %s128
      %p137 = scmp.eq.s32.totalorder %s24, 1
      %p138 = por %p136, %p137
      %p139 = scmp.ne.s32.totalorder %s128, %s129
      %p140 = scmp.eq.s32.totalorder %s24, 0
      %p141 = por %p139, %p140
      %p142 = scmp.ne.s32.totalorder %s128, %s129
      %p143 = scmp.eq.s32.totalorder %s25, 1
      %p144 = por %p142, %p143
      %p146 = scmp.ne.s32.totalorder %s129, %s145
      %p147 = scmp.eq.s32.totalorder %s25, 0
      %p148 = por %p146, %p147
      %s149 = ssub.s32 %s26, %s38
      %p150 = scmp.eq.s32.totalorder %s149, 0
      %s152 = sadd.s32 %s151, 1
      %s153 = scalar_select %p150, %s151, %s152
      %p156 = pneg %p150
      %p157 = scmp.eq.s32.totalorder %s19, 1
      %p158 = por %p156, %p157
      %p159 = scmp.ne.s32.totalorder %s151, %s154
      %p160 = scmp.eq.s32.totalorder %s19, 0
      %p161 = por %p159, %p160
      %p162 = scmp.ne.s32.totalorder %s151, %s154
      %p163 = scmp.eq.s32.totalorder %s24, 1
      %p164 = por %p162, %p163
      %p165 = scmp.ne.s32.totalorder %s154, %s155
      %p166 = scmp.eq.s32.totalorder %s24, 0
      %p167 = por %p165, %p166
      %p168 = scmp.ne.s32.totalorder %s154, %s155
      %p169 = scmp.eq.s32.totalorder %s25, 1
      %p170 = por %p168, %p169
      %p172 = scmp.ne.s32.totalorder %s155, %s171
      %p173 = scmp.eq.s32.totalorder %s25, 0
      %p174 = por %p172, %p173
      %p175 = scmp.le.s32.totalorder 1, %s19
      %p176 = scmp.lt.s32.totalorder %s19, 3
      %p177 = pnand %p175, %p176
      %p178 = pneg %p177
      // Predicated region
      $region9: #{tpu_custom_call.1} parent=5 // pred_check
        _
      $region10: #{tpu_custom_call.1} parent=5 // pred_check_branch
        %180 = sbr.rel (%p177) target = $region12
      $region11: #{tpu_custom_call.1} parent=5 // pred_region
        %s181 = ssub.s32 %s19, 1
      $region12: #{tpu_custom_call.1} parent=5 // pred_fallthru
        _
      %p182 = scmp.lt.s32.totalorder %s19, 2
      // Predicated region
      $region13: #{tpu_custom_call.1} parent=5 // pred_check
        %p183 = pneg %p182
      $region14: #{tpu_custom_call.1} parent=5 // pred_check_branch
        %185 = sbr.rel (%p183) target = $region16
      $region15: #{tpu_custom_call.1} parent=5 // pred_region
        // Predicated region
        $region17: #{tpu_custom_call.1} parent=15 // pred_check
          %p186 = pneg %p51
        $region18: #{tpu_custom_call.1} parent=15 // pred_check_branch
          %188 = sbr.rel (%p186) target = $region20
        $region19: #{tpu_custom_call.1} parent=15 // pred_region
          %s189 = sand.u32 %s41, 1
          %s190 = scalar_lea.sflag [#allocation6], %s189
          %s191 = sand.u32 %s41, 1
          %s192 = smul.addr %s191, 8
          %s193 = scalar_lea.vmem [#allocation5], %s192
          %s195 = ssub.s32 128, 128
          %196 = vsyncadd %s190, %s195
          %s197 = smul.addr %s26, 128
          %s198 = scalar_lea.hbm %s0, %s197
          %s200 = sshll.u32 %s193, 4
          %s201 = int_to_ptr.vmem [resolvable:$true] %s200
          %203 = dma.hbm_to_vmem [thread:$0]  %s198, 128, %s201, %s190
        $region20: #{tpu_custom_call.1} parent=15 // pred_fallthru
          _
        // Predicated region
        $region21: #{tpu_custom_call.1} parent=15 // pred_check
          %p204 = pneg %p79
        $region22: #{tpu_custom_call.1} parent=15 // pred_check_branch
          %206 = sbr.rel (%p204) target = $region24
        $region23: #{tpu_custom_call.1} parent=15 // pred_region
          %s207 = sand.u32 %s19, 1
          %s208 = scalar_lea.sflag [#allocation9], %s207
          %s209 = sand.u32 %s69, 1
          %s210 = smul.addr %s209, 16
          %s211 = scalar_lea.vmem [#allocation8], %s210
          %s212 = smul.u32 2, %s27
          %s214 = ssub.s32 256, 256
          %215 = vsyncadd %s208, %s214
          %s216 = smul.addr %s26, 2
          %s217 = sadd.s32 %s212, %s216
          %s218 = smul.addr %s217, 128
          %s219 = scalar_lea.hbm %s1, %s218
          %s220 = sshll.u32 %s211, 4
          %s221 = int_to_ptr.vmem [resolvable:$true] %s220
          %226 = dma.hbm_to_vmem [thread:$0]  %s219, 256, %s221, %s208, 128, 128, 8
        $region24: #{tpu_custom_call.1} parent=15 // pred_fallthru
          _
        // Predicated region
        $region25: #{tpu_custom_call.1} parent=15 // pred_check
          %p227 = pneg %p107
        $region26: #{tpu_custom_call.1} parent=15 // pred_check_branch
          %229 = sbr.rel (%p227) target = $region28
        $region27: #{tpu_custom_call.1} parent=15 // pred_region
          %s230 = sand.u32 %s19, 1
          %s231 = scalar_lea.sflag [#allocation9], %s230
          %s232 = sand.u32 %s97, 1
          %s233 = smul.addr %s232, 16
          %s234 = scalar_lea.vmem [#allocation10], %s233
          %s235 = smul.u32 2, %s27
          %s237 = ssub.s32 256, 256
          %238 = vsyncadd %s231, %s237
          %s239 = smul.addr %s26, 2
          %s240 = sadd.s32 %s235, %s239
          %s241 = smul.addr %s240, 128
          %s242 = scalar_lea.hbm %s2, %s241
          %s243 = sshll.u32 %s234, 4
          %s244 = int_to_ptr.vmem [resolvable:$true] %s243
          %249 = dma.hbm_to_vmem [thread:$0]  %s242, 256, %s244, %s231, 128, 128, 8
        $region28: #{tpu_custom_call.1} parent=15 // pred_fallthru
          _
        // Predicated region
        $region29: #{tpu_custom_call.1} parent=15 // pred_check
          %p250 = pneg %p135
        $region30: #{tpu_custom_call.1} parent=15 // pred_check_branch
          %252 = sbr.rel (%p250) target = $region32
        $region31: #{tpu_custom_call.1} parent=15 // pred_region
          %p253 = scmp.lt.s32.totalorder %s26, 1
          %s254 = scalar_select %p253, %s26, 1
          %p255 = scmp.lt.s32.totalorder %s27, 0
          %s256 = scalar_select %p255, %s27, 0
          %s257 = sadd.s32 %s256, %s254
          %s258 = smul.addr %s257, 2
          %s259 = scalar_lea.vmem %s3, %s258
        $region32: #{tpu_custom_call.1} parent=15 // pred_fallthru
          _
      $region16: #{tpu_custom_call.1} parent=5 // pred_fallthru
        _
      %p260 = scmp.le.s32.totalorder 1, %s19
      %p261 = scmp.lt.s32.totalorder %s19, 3
      %p262 = pnand %p260, %p261
      %p263 = pneg %p262
      // Predicated region
      $region33: #{tpu_custom_call.1} parent=5 // pred_check
        _
      $region34: #{tpu_custom_call.1} parent=5 // pred_check_branch
        %265 = sbr.rel (%p262) target = $region36
      $region35: #{tpu_custom_call.1} parent=5 // pred_region
        %s266 = ssub.s32 %s19, 1
        %s267 = sand.u32 %s44, 1
        %s268 = scalar_lea.sflag [#allocation6], %s267
        %s269 = sand.u32 %s44, 1
        %s270 = smul.addr %s269, 8
        %s271 = scalar_lea.vmem [#allocation5], %s270
        // Predicated region
        $region37: #{tpu_custom_call.1} parent=35 // pred_check
          %p272 = pneg %p57
        $region38: #{tpu_custom_call.1} parent=35 // pred_check_branch
          %274 = sbr.rel (%p272) target = $region40
        $region39: #{tpu_custom_call.1} parent=35 // pred_region
          %275 = dma.done %s268, 128
        $region40: #{tpu_custom_call.1} parent=35 // pred_fallthru
          _
        %s276 = sand.u32 %s24, 1
        %s277 = scalar_lea.sflag [#allocation9], %s276
        %s278 = sand.u32 %s72, 1
        %s279 = smul.addr %s278, 16
        %s280 = scalar_lea.vmem [#allocation8], %s279
        // Predicated region
        $region41: #{tpu_custom_call.1} parent=35 // pred_check
          %p281 = pneg %p85
        $region42: #{tpu_custom_call.1} parent=35 // pred_check_branch
          %283 = sbr.rel (%p281) target = $region44
        $region43: #{tpu_custom_call.1} parent=35 // pred_region
          %284 = dma.done %s277, 256
        $region44: #{tpu_custom_call.1} parent=35 // pred_fallthru
          _
        %s285 = sand.u32 %s24, 1
        %s286 = scalar_lea.sflag [#allocation9], %s285
        %s287 = sand.u32 %s100, 1
        %s288 = smul.addr %s287, 16
        %s289 = scalar_lea.vmem [#allocation10], %s288
        // Predicated region
        $region45: #{tpu_custom_call.1} parent=35 // pred_check
          %p290 = pneg %p113
        $region46: #{tpu_custom_call.1} parent=35 // pred_check_branch
          %292 = sbr.rel (%p290) target = $region48
        $region47: #{tpu_custom_call.1} parent=35 // pred_region
          %293 = dma.done %s286, 256
        $region48: #{tpu_custom_call.1} parent=35 // pred_fallthru
          _
        %s294 = sand.u32 %s44, 1
        %s295 = scalar_lea.sflag [#allocation6], %s294
        %s296 = sand.u32 %s44, 1
        %s297 = smul.addr %s296, 8
        %s298 = scalar_lea.vmem [#allocation5], %s297
        %p299 = pneg %p57
        %p300 = pneg %p54
        %s301 = sand.u32 %s24, 1
        %s302 = scalar_lea.sflag [#allocation9], %s301
        %s303 = sand.u32 %s72, 1
        %s304 = smul.addr %s303, 16
        %s305 = scalar_lea.vmem [#allocation8], %s304
        %p306 = pneg %p85
        %p307 = pneg %p82
        %s308 = sand.u32 %s24, 1
        %s309 = scalar_lea.sflag [#allocation9], %s308
        %s310 = sand.u32 %s100, 1
        %s311 = smul.addr %s310, 16
        %s312 = scalar_lea.vmem [#allocation10], %s311
        %p313 = pneg %p113
        %p314 = pneg %p110
        %p315 = scmp.lt.s32.totalorder %s28, 1
        %s316 = scalar_select %p315, %s28, 1
        %p317 = scmp.lt.s32.totalorder %s29, 0
        %s318 = scalar_select %p317, %s29, 0
        %s319 = sadd.s32 %s318, %s316
        %s320 = smul.addr %s319, 2
        %s321 = scalar_lea.vmem %s3, %s320
        %p322 = pneg %p141
        %p323 = pneg %p138
        %p324 = pneg %p167
        %p325 = pneg %p164
        %s326 = sand.u32 %s154, 1
        %s327 = scalar_lea.sflag [#allocation7], %s326
        %s328 = sand.u32 %s154, 1
        %s329 = smul.addr %s328, 8
        %s330 = scalar_lea.vmem [#allocation11], %s329
        %s331 = smul.u32 2, %s29
        %s332 = smul.u32 2, %s29
        %p333 = scmp.lt.s32.totalorder %s28, 1
        %s334 = scalar_select %p333, %s28, 1
        %p335 = scmp.lt.s32.totalorder %s29, 0
        %s336 = scalar_select %p335, %s29, 0
        %s337 = sadd.s32 %s336, %s334
        %s338 = smul.addr %s337, 2
        %s339 = scalar_lea.vmem %s3, %s338
        %p341 = scmp.eq.s32.totalorder %s29, 0
        // Predicated region
        $region49: #{tpu_custom_call.1} parent=35 // pred_check
          %p342 = pneg %p341
        $region50: #{tpu_custom_call.1} parent=35 // pred_check_branch
          %344 = sbr.rel (%p342) target = $region52
        $region51: #{tpu_custom_call.1} parent=35 // pred_region
          %vm345 = vcmask 7168
          %346 = vst.msk [vmem:[#allocation2] sm:$0xff] %vm345, -inf
          %347 = vst.msk [vmem:[#allocation3] sm:$0xff] %vm345, 0.0
          %vm348 = vcmask 261120
          %349 = vst.msk [vmem:[#allocation4] sm:$0xff] %vm348, 0.0
        $region52: #{tpu_custom_call.1} parent=35 // pred_fallthru
          _
        %v350 = vld [vmem:[%s271] sm:$0xff]
        %v351 = vmul.f32 %v350, 10.0
        %v352 = vpack.c.bf16 %v351, %v351
        %v353 = vld [vmem:[%s280] sm:$0xff]
        %v354 = vld [vmem:[%s280 + $0x8] sm:$0xff]
        %v355 = vpack.c.bf16 %v354, %v353
        %vm356 = vcmask 261120
        %v358 = vsel %vm356, %v352, 0
        %v361 = vsel %vm356, %v355, 0
        %363 = vmatprep.subr.bf16.mxu0 0
        %364 = vmatpush1.bf16.xpose.msra.mxu0 %v361
        %365 = vmatprep.subr.bf16.mxu0 0
        %366 = vmatpush1.bf16.xpose.msra.mxu0 0
        %367 = vmatprep.subr.bf16.mxu0 0
        %368 = vmatpush1.bf16.xpose.msra.mxu0 0
        %369 = vmatprep.subr.bf16.mxu0 0
        %370 = vmatpush1.bf16.xpose.msra.mxu0 0
        %371 = vmatprep.subr.bf16.mxu0 0
        %372 = vmatpush1.bf16.xpose.msra.mxu0 0
        %373 = vmatprep.subr.bf16.mxu0 0
        %374 = vmatpush1.bf16.xpose.msra.mxu0 0
        %375 = vmatprep.subr.bf16.mxu0 0
        %376 = vmatpush1.bf16.xpose.msra.mxu0 0
        %377 = vmatprep.subr.bf16.mxu0 0
        %378 = vmatpush1.bf16.xpose.msra.mxu0 0
        %379 = vmatprep.subr.bf16.mxu0 0
        %380 = vmatpush1.bf16.xpose.msra.mxu0 0
        %381 = vmatprep.subr.bf16.mxu0 0
        %382 = vmatpush1.bf16.xpose.msra.mxu0 0
        %383 = vmatprep.subr.bf16.mxu0 0
        %384 = vmatpush1.bf16.xpose.msra.mxu0 0
        %385 = vmatprep.subr.bf16.mxu0 0
        %386 = vmatpush1.bf16.xpose.msra.mxu0 0
        %387 = vmatprep.subr.bf16.mxu0 0
        %388 = vmatpush1.bf16.xpose.msra.mxu0 0
        %389 = vmatprep.subr.bf16.mxu0 0
        %390 = vmatpush1.bf16.xpose.msra.mxu0 0
        %391 = vmatprep.subr.bf16.mxu0 0
        %392 = vmatpush1.bf16.xpose.msra.mxu0 0
        %393 = vmatprep.subr.bf16.mxu0 0
        %394 = vmatpush1.bf16.xpose.msra.mxu0 0
        %395 = vmatprep.mubr.bf16.mxu0 0
        %396 = vmatmul.mubr.bf16.gmra.mrb[0].mxu0 %v358
        %v397 = vpop.f32.mrb[0].mxu0
        %v398 = vadd.f32 0.0, %v397
        %v399 = vpop.f32.mrb[0].mxu0
        %v400 = vpop.f32.mrb[0].mxu0
        %v401 = vpop.f32.mrb[0].mxu0
        %402 = vdwg.mxu0
        %v403 = vld [vmem:[#allocation2] sm:$0xff]
        %vm404 = vcmask 130048
        %v405 = vsel %vm404, %v398, -inf
        %406 = vmax.xlane.f32.xlu0 %v405
        %v407 = vpop.xlane.xlu0 %406
        %v408 = vmax.f32 %v403, %v407
        %v409 = vsub.f32 %v403, %v408
        %v410 = vmul.f32 %v409, 1.442695
        %v411 = vpow.pop %v410
        %413 = vset.pattern.permute.xlu0 0
        %414 = vperm.xlu0 %413, %v408
        %v415 = vpop.permute.xlu0 %414
        %v417 = vsub.f32 %v398, %v415
        %v418 = vmul.f32 %v417, 1.442695
        %v419 = vpow.pop %v418
        %v420 = vld [vmem:[#allocation3] sm:$0xff]
        %v421 = vmul.f32 %v411, %v420
        %v422 = vsel %vm404, %v419, 0.0
        %423 = vadd.xlane.f32.xlu0 %v422
        %v424 = vpop.xlane.xlu0 %423
        %v425 = vadd.f32 %v421, %v424
        %vm426 = vcmask 7168
        %427 = vst.msk [vmem:[#allocation3] sm:$0xff] %vm426, %v425
        %v428 = vld [vmem:[%s339] sm:$0x3]
        %v429 = vunpack.c.0.s8 %v428
        %v430 = vand.u32 %v429, 255
        %vm431 = vcmp.ge.s32.totalorder %v430, 51
        %v432 = vsel %vm431, 1.25, 0.0
        %v433 = vmul.f32 %v419, %v432
        %v434 = vpack.c.bf16 %v433, %v433
        %v435 = vld [vmem:[%s289] sm:$0xff]
        %v436 = vld [vmem:[%s289 + $0x8] sm:$0xff]
        %v437 = vpack.c.bf16 %v436, %v435
        %v438 = vld [vmem:[#allocation4] sm:$0xff]
        %440 = vset.pattern.permute.xlu0 0
        %441 = vperm.xlu0 %440, %v411
        %v442 = vpop.permute.xlu0 %441
        %v444 = vmul.f32 %v442, %v438
        %v446 = vsel %vm404, %v434, 0
        %448 = vmatprep.subr.bf16.mxu0 0
        %449 = vmatpush1.bf16.msra.mxu0 %v437
        %450 = vmatprep.subr.bf16.mxu0 0
        %451 = vmatpush1.bf16.msra.mxu0 0
        %452 = vmatprep.subr.bf16.mxu0 0
        %453 = vmatpush1.bf16.msra.mxu0 0
        %454 = vmatprep.subr.bf16.mxu0 0
        %455 = vmatpush1.bf16.msra.mxu0 0
        %456 = vmatprep.subr.bf16.mxu0 0
        %457 = vmatpush1.bf16.msra.mxu0 0
        %458 = vmatprep.subr.bf16.mxu0 0
        %459 = vmatpush1.bf16.msra.mxu0 0
        %460 = vmatprep.subr.bf16.mxu0 0
        %461 = vmatpush1.bf16.msra.mxu0 0
        %462 = vmatprep.subr.bf16.mxu0 0
        %463 = vmatpush1.bf16.msra.mxu0 0
        %464 = vmatprep.subr.bf16.mxu0 0
        %465 = vmatpush1.bf16.msra.mxu0 0
        %466 = vmatprep.subr.bf16.mxu0 0
        %467 = vmatpush1.bf16.msra.mxu0 0
        %468 = vmatprep.subr.bf16.mxu0 0
        %469 = vmatpush1.bf16.msra.mxu0 0
        %470 = vmatprep.subr.bf16.mxu0 0
        %471 = vmatpush1.bf16.msra.mxu0 0
        %472 = vmatprep.subr.bf16.mxu0 0
        %473 = vmatpush1.bf16.msra.mxu0 0
        %474 = vmatprep.subr.bf16.mxu0 0
        %475 = vmatpush1.bf16.msra.mxu0 0
        %476 = vmatprep.subr.bf16.mxu0 0
        %477 = vmatpush1.bf16.msra.mxu0 0
        %478 = vmatprep.subr.bf16.mxu0 0
        %479 = vmatpush1.bf16.msra.mxu0 0
        %480 = vmatprep.mubr.bf16.mxu0 0
        %481 = vmatmul.mubr.bf16.gmra.mrb[0].mxu0 %v446
        %v482 = vpop.f32.mrb[0].mxu0
        %v483 = vadd.f32 0.0, %v482
        %v484 = vpop.f32.mrb[0].mxu0
        %v485 = vpop.f32.mrb[0].mxu0
        %v486 = vpop.f32.mrb[0].mxu0
        %487 = vdwg.mxu0
        %v488 = vadd.f32 %v444, %v483
        %489 = vst.msk [vmem:[#allocation4] sm:$0xff] %vm356, %v488
        %490 = vst.msk [vmem:[#allocation2] sm:$0xff] %vm426, %v408
        // Predicated region
        $region53: #{tpu_custom_call.1} parent=35 // pred_check
          %p491 = pneg %p341
        $region54: #{tpu_custom_call.1} parent=35 // pred_check_branch
          %493 = sbr.rel (%p491) target = $region56
        $region55: #{tpu_custom_call.1} parent=35 // pred_region
          %v494 = vld [vmem:[#allocation4] sm:$0xff]
          %v495 = vld [vmem:[#allocation3] sm:$0xff]
          %497 = vset.pattern.permute.xlu0 0
          %498 = vperm.xlu0 %497, %v495
          %v499 = vpop.permute.xlu0 %498
          %v501 = vrcp.pop %v499
          %v502 = vmul.f32 %v494, %v501
          %503 = vst.msk [vmem:[%s330] sm:$0xff] %vm356, %v502
        $region56: #{tpu_custom_call.1} parent=35 // pred_fallthru
          _
        %s504 = sand.u32 %s154, 1
        %s505 = scalar_lea.sflag [#allocation7], %s504
        %s506 = sand.u32 %s154, 1
        %s507 = smul.addr %s506, 8
        %s508 = scalar_lea.vmem [#allocation11], %s507
        // Predicated region
        $region57: #{tpu_custom_call.1} parent=35 // pred_check
          %p509 = pneg %p164
        $region58: #{tpu_custom_call.1} parent=35 // pred_check_branch
          %511 = sbr.rel (%p509) target = $region60
        $region59: #{tpu_custom_call.1} parent=35 // pred_region
          %s513 = ssub.s32 128, 128
          %514 = vsyncadd %s505, %s513
          %s515 = smul.addr %s28, 128
          %s516 = scalar_lea.hbm %s4, %s515
          %s518 = sshll.u32 %s508, 4
          %s519 = int_to_ptr.vmem [resolvable:$true] %s518
          %521 = dma.vmem_to_hbm [thread:$0]  %s519, 128, %s516, %s505
        $region60: #{tpu_custom_call.1} parent=35 // pred_fallthru
          _
      $region36: #{tpu_custom_call.1} parent=5 // pred_fallthru
        _
      %p522 = scmp.le.s32.totalorder 2, %s19
      // Predicated region
      $region61: #{tpu_custom_call.1} parent=5 // pred_check
        %p523 = pneg %p522
      $region62: #{tpu_custom_call.1} parent=5 // pred_check_branch
        %525 = sbr.rel (%p523) target = $region64
      $region63: #{tpu_custom_call.1} parent=5 // pred_region
        %s526 = ssub.s32 %s19, 2
        // Predicated region
        $region65: #{tpu_custom_call.1} parent=63 // pred_check
          %p527 = pneg %p170
        $region66: #{tpu_custom_call.1} parent=63 // pred_check_branch
          %529 = sbr.rel (%p527) target = $region68
        $region67: #{tpu_custom_call.1} parent=63 // pred_region
          %s530 = sand.u32 %s155, 1
          %s531 = scalar_lea.sflag [#allocation7], %s530
          %s532 = sand.u32 %s155, 1
          %s533 = smul.addr %s532, 8
          %s534 = scalar_lea.vmem [#allocation11], %s533
          %535 = dma.done %s531, 128
        $region68: #{tpu_custom_call.1} parent=63 // pred_fallthru
          _
      $region64: #{tpu_custom_call.1} parent=5 // pred_fallthru
        _
    $region6: #{tpu_custom_call.1} parent=1 // loop_footer
      %s23 = sadd.s32 1, %s19
    $region7: #{tpu_custom_call.1} parent=1 // loop_footer_branch
      %18 = sbr.rel target = $region3
    $region8: #{tpu_custom_call.1} parent=1 // loop_exit
      _
    %536 = vsyncpa [#allocation6], 1
    %s537 = scalar_lea.sflag [#allocation6], 1
    %538 = vsyncpa %s537, 1
    %539 = vsyncpa [#allocation9], 1
    %s540 = scalar_lea.sflag [#allocation9], 1
    %541 = vsyncpa %s540, 1
    %542 = vsyncpa [#allocation7], 1
    %s543 = scalar_lea.sflag [#allocation7], 1
    %544 = vsyncpa %s543, 1

</llo_original>
